<compile_context>
chip_gen: v7x
topology: tpu7x:2x2x1
jax: 0.10.0
libtpu: 0.0.40
codegen_flags: <defaults>
</compile_context>

<pallas_src>
import functools
import math

import jax
import jax.numpy as jnp
import numpy as np
from jax.experimental import pallas as pl
from jax.experimental.pallas import tpu as pltpu


def count_nodes(depth, num_branches):
    return int(num_branches ** depth)


# --------------------------- host-side parameter prep -------------------------

def prep_gsdt_params(raw_params, leaf_logit, num_branches):
    """One-time parameter factorization + GEMM packing (pure JAX, runs once).

    Returns per-layer dicts with:
      w_sq  (F, K*N)        weights fed by x*x      (= -0.5 * inva, permuted)
      w_x   (F, (1+R)*K*N)  weights fed by x        (= [w*inva | w2_r ...])
      bias  (1, K*N)        -0.5 * (c_w + logdet const)
      clr   (R, K*N)        per-rank constants  c_r = sum_f w_f * w2_{f,r}
    plus the leaf-logit table transposed/permuted to (C, L) kernel lane order.
    """
    K = num_branches
    layers = []
    perm = jnp.zeros((1,), jnp.int32)      # lane position -> original node index
    for (weight, cov_di, cov_lr) in raw_params:
        M, F = weight.shape
        R = cov_lr.shape[-1]
        N = M // K
        kn = K * N

        a = jax.nn.softplus(cov_di)                               # (M, F)
        inva = 1.0 / a
        au = cov_lr * inva[:, :, None]                            # (M, F, R) = A^{-1} U
        cap = (jnp.eye(R, dtype=jnp.float32)[None]
               + jnp.einsum('mfr,mfs->mrs', cov_lr, au))          # I + U^T A^{-1} U
        g = jnp.linalg.cholesky(jnp.linalg.inv(cap))              # Cap^{-1} = G G^T
        w2 = jnp.einsum('mfr,mrs->mfs', au, g)                    # (M, F, R)
        const = jnp.linalg.slogdet(cap)[1] + jnp.sum(jnp.log(a), axis=-1)   # (M,)
        c_w = jnp.sum(weight * weight * inva, axis=-1)                      # (M,)
        c_lr = jnp.einsum('mf,mfr->rm', weight, w2)                         # (R, M)

        # branch-major column order: column j = k*N + p  ->  component perm[p]*K + k
        col = (perm[None, :] * K
               + jnp.arange(K, dtype=jnp.int32)[:, None]).reshape(-1)       # (kn,)

        w_sq = -0.5 * inva[col].T                                           # (F, kn)
        w_x = jnp.concatenate([(weight * inva)[col].T]
                              + [w2[col, :, r].T for r in range(R)],
                              axis=1)                                        # (F, (1+R)kn)
        bias = (-0.5 * (c_w + const))[col][None, :]                          # (1, kn)
        clr = c_lr[:, col]                                                   # (R, kn)

        layers.append(dict(w_sq=w_sq, w_x=w_x, bias=bias, clr=clr,
                           N=N, K=K, R=R))
        perm = col   # path lane ordering seen by the next layer / the leaves

    leaf_t = jnp.transpose(leaf_logit[perm], (1, 0))                         # (C, L)
    return layers, leaf_t


# ------------------------------- fused Pallas kernel ---------------------------

def _gsdt_fused_kernel(x_ref, *refs, layer_meta):
    """Fused GSDT forward for one batch tile: all layers + leaf selection.

    refs = [w_sq_0, w_x_0, bias_0, clr_0, ..., leaf_t, out_ref, path_scratch]
    """
    path_scr = refs[-1]          # VMEM scratch (Bt, L_final)
    out_ref = refs[-2]           # (Bt, C)
    leaf_ref = refs[-3]          # (C, L_final), permuted to kernel lane order
    lrefs = refs[:-3]

    x = x_ref[...]                                   # (Bt, F)
    xsq = x * x
    bt = x.shape[0]
    path = jnp.ones((bt, 1), jnp.float32)

    for li, (N, K, R) in enumerate(layer_meta):
        w_sq = lrefs[4 * li][...]                    # (F, kn)
        w_x = lrefs[4 * li + 1][...]                 # (F, (1+R)*kn)
        bias = lrefs[4 * li + 2][...]                # (1, kn)
        clr = lrefs[4 * li + 3][...]                 # (R, kn)
        kn = K * N

        # MXU GEMMs with f32 accumulation (expansion form; constants folded in).
        g = jnp.dot(x, w_x, preferred_element_type=jnp.float32)     # (Bt, (1+R)*kn)
        h = jnp.dot(xsq, w_sq, preferred_element_type=jnp.float32)  # (Bt, kn)
        logit = g[:, 0:kn] + h + bias
        for r in range(R):                           # Woodbury low-rank correction
            v = g[:, (1 + r) * kn:(2 + r) * kn] - clr[r:r + 1, :]
            logit = logit + 0.5 * (v * v)

        # Per-node softmax over the K branch-major lane blocks (width N each):
        # lane p of block k is branch k of the node at incoming path lane p.
        lks = [logit[:, k * N:(k + 1) * N] for k in range(K)]
        m = lks[0]
        for lk in lks[1:]:
            m = jnp.maximum(m, lk)
        eks = [jnp.exp(lk - m) for lk in lks]
        s = eks[0]
        for ek in eks[1:]:
            s = s + ek
        scaled = path * pl.reciprocal(s, approx=True)       # (Bt, N)

        # New path (lane-dense, order k*N + p) assembled in VMEM scratch.
        for k in range(K):
            path_scr[:, k * N:(k + 1) * N] = scaled * eks[k]
        path = path_scr[:, 0:kn]                            # (Bt, kn)

    # Leaf selection: first maximal path lane (kernel lane order; ties are
    # measure-zero for continuous inputs), exact one-hot gather of leaf logits.
    L = path.shape[1]
    mx = jnp.max(path, axis=1, keepdims=True)
    iota = jax.lax.broadcasted_iota(jnp.int32, path.shape, 1)
    cand = jnp.where(path == mx, iota, jnp.int32(L))
    idx = jnp.min(cand, axis=1, keepdims=True)
    onehot = (iota == idx).astype(jnp.float32)              # (Bt, L)
    leaf_t = leaf_ref[...]                                  # (C, L)
    for c in range(leaf_t.shape[0]):
        out_ref[:, c:c + 1] = jnp.sum(onehot * leaf_t[c:c + 1, :],
                                      axis=1, keepdims=True)


# ------------------------------- GSDT forward wrapper --------------------------

def _pick_batch_tile(batch):
    for bt in (256, 512, 128, 64, 32, 16, 8):
        if batch % bt == 0:
            return bt
    return batch        # small / odd batch: single whole-batch tile


def gsdt_forward(x, layers, leaf_t):
    B, F = x.shape
    C, L = leaf_t.shape
    bt = _pick_batch_tile(B)
    layer_meta = tuple((p['N'], p['K'], p['R']) for p in layers)

    in_specs = [pl.BlockSpec((bt, F), lambda b: (b, 0))]
    args = [x]
    for p in layers:
        for name in ('w_sq', 'w_x', 'bias', 'clr'):
            a = p[name]
            in_specs.append(pl.BlockSpec(a.shape, lambda b: (0, 0)))  # resident
            args.append(a)
    in_specs.append(pl.BlockSpec(leaf_t.shape, lambda b: (0, 0)))
    args.append(leaf_t)

    return pl.pallas_call(
        functools.partial(_gsdt_fused_kernel, layer_meta=layer_meta),
        out_shape=jax.ShapeDtypeStruct((B, C), jnp.float32),
        grid=(B // bt,),
        in_specs=in_specs,
        out_specs=pl.BlockSpec((bt, C), lambda b: (b, 0)),
        scratch_shapes=[pltpu.VMEM((bt, L), jnp.float32)],
        compiler_params=pltpu.CompilerParams(
            dimension_semantics=("parallel",),          # megacore over batch tiles
            vmem_limit_bytes=32 * 1024 * 1024),
    )(*args)


# --------------------------- pure-JAX reference (torch math) -------------------

def ref_forward(x, raw_params, leaf_logit, num_branches):
    B = x.shape[0]
    path = jnp.ones((B, 1), jnp.float32)
    for (weight, cov_di, cov_lr) in raw_params:
        M, F = weight.shape
        R = cov_lr.shape[-1]
        N = M // num_branches
        a = jax.nn.softplus(cov_di)
        a_inv = jax.vmap(jnp.diag)(1.0 / a)
        a_mat = jax.vmap(jnp.diag)(a)
        ut = jnp.swapaxes(cov_lr, 1, 2)
        cap = jnp.eye(R, dtype=jnp.float32)[None] + ut @ a_inv @ cov_lr
        var_inv = a_inv - a_inv @ cov_lr @ jnp.linalg.inv(cap) @ ut @ a_inv
        diff = x[:, None, :] - weight[None]
        out1 = jnp.einsum('bmf,mfg,bmg->bm', diff, var_inv, diff)
        out2 = jnp.linalg.slogdet(cap)[1] + jnp.linalg.slogdet(a_mat)[1]
        prob = -(out1 + out2[None]) / 2.0
        prob = jax.nn.softmax(prob.reshape(B, N, num_branches), axis=2)
        path = (path[:, :, None] * prob).reshape(B, -1)
    idx = jnp.argmax(path, axis=1)
    return leaf_logit[idx]


# ------------------------------------ main --------------------------------------

if __name__ == "__main__":
    B, F, C = 4, 16, 5                   # batch, in_features, out_classes
    depth, num_branches, rank = 2, 6, 2  # GSDT defaults (cov='both')

    key = jax.random.PRNGKey(0)
    kx, kleaf, *klayers = jax.random.split(key, 2 + depth)

    x = jax.random.normal(kx, (B, F), dtype=jnp.float32)

    raw_params = []
    for d in range(depth):
        num_nodes = count_nodes(d, num_branches)
        M = num_nodes * num_branches
        kw, kd, kl = jax.random.split(klayers[d], 3)
        weight = 0.5 * jax.random.normal(kw, (M, F), dtype=jnp.float32)
        cov_di = (math.log(math.e - 1.0)
                  + 0.2 * jax.random.normal(kd, (M, F), dtype=jnp.float32))
        cov_lr = jax.random.normal(kl, (M, F, rank), dtype=jnp.float32) / \
            math.sqrt(F * rank)
        raw_params.append((weight, cov_di, cov_lr))

    num_leaves = count_nodes(depth, num_branches)
    leaf_logit = jax.random.normal(kleaf, (num_leaves, C), dtype=jnp.float32)

    layers, leaf_t = prep_gsdt_params(raw_params, leaf_logit, num_branches)

    out = jax.block_until_ready(gsdt_forward(x, layers, leaf_t))
    ref = jax.block_until_ready(ref_forward(x, raw_params, leaf_logit, num_branches))
    np.testing.assert_allclose(np.asarray(out), np.asarray(ref), rtol=1e-4, atol=1e-5)

    print("KERNEL_OK")
</pallas_src>

<mosaic_0001>
module attributes {stable_mosaic.version = 11 : i64} {
  func.func @_gsdt_fused_kernel(%arg0: i32, %arg1: memref<4x16xf32, #tpu.memory_space<vmem>>, %arg2: memref<16x6xf32, #tpu.memory_space<vmem>>, %arg3: memref<16x18xf32, #tpu.memory_space<vmem>>, %arg4: memref<1x6xf32, #tpu.memory_space<vmem>>, %arg5: memref<2x6xf32, #tpu.memory_space<vmem>>, %arg6: memref<16x36xf32, #tpu.memory_space<vmem>>, %arg7: memref<16x108xf32, #tpu.memory_space<vmem>>, %arg8: memref<1x36xf32, #tpu.memory_space<vmem>>, %arg9: memref<2x36xf32, #tpu.memory_space<vmem>>, %arg10: memref<5x36xf32, #tpu.memory_space<vmem>>, %arg11: memref<4x5xf32, #tpu.memory_space<vmem>>, %arg12: memref<4x36xf32, #tpu.memory_space<vmem>>) attributes {dimension_semantics = [#tpu.dimension_semantics<parallel>], iteration_bounds = array<i64: 1>, scalar_prefetch = 0 : i64, scratch_operands = 1 : i64, tpu.core_type = #tpu.core_type<tc>, window_params = [{transform_indices = @transform_0, window_bounds = array<i64: 4, 16>}, {pipeline_mode = #tpu.pipeline_mode<synchronous>, transform_indices = @transform_1, window_bounds = array<i64: 16, 6>}, {pipeline_mode = #tpu.pipeline_mode<synchronous>, transform_indices = @transform_2, window_bounds = array<i64: 16, 18>}, {pipeline_mode = #tpu.pipeline_mode<synchronous>, transform_indices = @transform_3, window_bounds = array<i64: 1, 6>}, {pipeline_mode = #tpu.pipeline_mode<synchronous>, transform_indices = @transform_4, window_bounds = array<i64: 2, 6>}, {pipeline_mode = #tpu.pipeline_mode<synchronous>, transform_indices = @transform_5, window_bounds = array<i64: 16, 36>}, {pipeline_mode = #tpu.pipeline_mode<synchronous>, transform_indices = @transform_6, window_bounds = array<i64: 16, 108>}, {pipeline_mode = #tpu.pipeline_mode<synchronous>, transform_indices = @transform_7, window_bounds = array<i64: 1, 36>}, {pipeline_mode = #tpu.pipeline_mode<synchronous>, transform_indices = @transform_8, window_bounds = array<i64: 2, 36>}, {pipeline_mode = #tpu.pipeline_mode<synchronous>, transform_indices = @transform_9, window_bounds = array<i64: 5, 36>}, {transform_indices = @transform_10, window_bounds = array<i64: 4, 5>}]} {
    %c0 = arith.constant 0 : index
    %c0_0 = arith.constant 0 : index
    %0 = vector.load %arg1[%c0, %c0_0] : memref<4x16xf32, #tpu.memory_space<vmem>>, vector<4x16xf32>
    %1 = arith.mulf %0, %0 : vector<4x16xf32>
    %cst = arith.constant 1.000000e+00 : f32
    %2 = vector.broadcast %cst : f32 to vector<4x1xf32>
    %c0_1 = arith.constant 0 : index
    %c0_2 = arith.constant 0 : index
    %3 = vector.load %arg2[%c0_1, %c0_2] : memref<16x6xf32, #tpu.memory_space<vmem>>, vector<16x6xf32>
    %c0_3 = arith.constant 0 : index
    %c0_4 = arith.constant 0 : index
    %4 = vector.load %arg3[%c0_3, %c0_4] : memref<16x18xf32, #tpu.memory_space<vmem>>, vector<16x18xf32>
    %c0_5 = arith.constant 0 : index
    %c0_6 = arith.constant 0 : index
    %5 = vector.load %arg4[%c0_5, %c0_6] : memref<1x6xf32, #tpu.memory_space<vmem>>, vector<1x6xf32>
    %c0_7 = arith.constant 0 : index
    %c0_8 = arith.constant 0 : index
    %6 = vector.load %arg5[%c0_7, %c0_8] : memref<2x6xf32, #tpu.memory_space<vmem>>, vector<2x6xf32>
    %cst_9 = arith.constant dense<0.000000e+00> : vector<4x18xf32>
    %7 = tpu.matmul %0, %4, %cst_9 {dimension_numbers = #tpu.dot_dimension_numbers<[1], [0], [0], [1], [0, 0, 1, 1], [], []>} : vector<4x16xf32>, vector<16x18xf32>, vector<4x18xf32> -> vector<4x18xf32>
    %cst_10 = arith.constant dense<0.000000e+00> : vector<4x6xf32>
    %8 = tpu.matmul %1, %3, %cst_10 {dimension_numbers = #tpu.dot_dimension_numbers<[1], [0], [0], [1], [0, 0, 1, 1], [], []>} : vector<4x16xf32>, vector<16x6xf32>, vector<4x6xf32> -> vector<4x6xf32>
    %9 = vector.extract_strided_slice %7 {offsets = [0, 0], sizes = [4, 6], strides = [1, 1]} : vector<4x18xf32> to vector<4x6xf32>
    %10 = arith.addf %9, %8 : vector<4x6xf32>
    %11 = vector.broadcast %5 : vector<1x6xf32> to vector<4x6xf32>
    %12 = arith.addf %10, %11 : vector<4x6xf32>
    %13 = vector.extract_strided_slice %7 {offsets = [0, 6], sizes = [4, 6], strides = [1, 1]} : vector<4x18xf32> to vector<4x6xf32>
    %14 = vector.extract_strided_slice %6 {offsets = [0, 0], sizes = [1, 6], strides = [1, 1]} : vector<2x6xf32> to vector<1x6xf32>
    %15 = vector.broadcast %14 : vector<1x6xf32> to vector<4x6xf32>
    %16 = arith.subf %13, %15 : vector<4x6xf32>
    %17 = arith.mulf %16, %16 : vector<4x6xf32>
    %cst_11 = arith.constant 5.000000e-01 : f32
    %18 = vector.broadcast %cst_11 : f32 to vector<4x6xf32>
    %19 = arith.mulf %18, %17 : vector<4x6xf32>
    %20 = arith.addf %12, %19 : vector<4x6xf32>
    %21 = vector.extract_strided_slice %7 {offsets = [0, 12], sizes = [4, 6], strides = [1, 1]} : vector<4x18xf32> to vector<4x6xf32>
    %22 = vector.extract_strided_slice %6 {offsets = [1, 0], sizes = [1, 6], strides = [1, 1]} : vector<2x6xf32> to vector<1x6xf32>
    %23 = vector.broadcast %22 : vector<1x6xf32> to vector<4x6xf32>
    %24 = arith.subf %21, %23 : vector<4x6xf32>
    %25 = arith.mulf %24, %24 : vector<4x6xf32>
    %cst_12 = arith.constant 5.000000e-01 : f32
    %26 = vector.broadcast %cst_12 : f32 to vector<4x6xf32>
    %27 = arith.mulf %26, %25 : vector<4x6xf32>
    %28 = arith.addf %20, %27 : vector<4x6xf32>
    %29 = vector.extract_strided_slice %28 {offsets = [0, 0], sizes = [4, 1], strides = [1, 1]} : vector<4x6xf32> to vector<4x1xf32>
    %30 = vector.extract_strided_slice %28 {offsets = [0, 1], sizes = [4, 1], strides = [1, 1]} : vector<4x6xf32> to vector<4x1xf32>
    %31 = vector.extract_strided_slice %28 {offsets = [0, 2], sizes = [4, 1], strides = [1, 1]} : vector<4x6xf32> to vector<4x1xf32>
    %32 = vector.extract_strided_slice %28 {offsets = [0, 3], sizes = [4, 1], strides = [1, 1]} : vector<4x6xf32> to vector<4x1xf32>
    %33 = vector.extract_strided_slice %28 {offsets = [0, 4], sizes = [4, 1], strides = [1, 1]} : vector<4x6xf32> to vector<4x1xf32>
    %34 = vector.extract_strided_slice %28 {offsets = [0, 5], sizes = [4, 1], strides = [1, 1]} : vector<4x6xf32> to vector<4x1xf32>
    %35 = arith.maximumf %29, %30 : vector<4x1xf32>
    %36 = arith.maximumf %35, %31 : vector<4x1xf32>
    %37 = arith.maximumf %36, %32 : vector<4x1xf32>
    %38 = arith.maximumf %37, %33 : vector<4x1xf32>
    %39 = arith.maximumf %38, %34 : vector<4x1xf32>
    %40 = arith.subf %29, %39 : vector<4x1xf32>
    %41 = math.exp %40 : vector<4x1xf32>
    %42 = arith.subf %30, %39 : vector<4x1xf32>
    %43 = math.exp %42 : vector<4x1xf32>
    %44 = arith.subf %31, %39 : vector<4x1xf32>
    %45 = math.exp %44 : vector<4x1xf32>
    %46 = arith.subf %32, %39 : vector<4x1xf32>
    %47 = math.exp %46 : vector<4x1xf32>
    %48 = arith.subf %33, %39 : vector<4x1xf32>
    %49 = math.exp %48 : vector<4x1xf32>
    %50 = arith.subf %34, %39 : vector<4x1xf32>
    %51 = math.exp %50 : vector<4x1xf32>
    %52 = arith.addf %41, %43 : vector<4x1xf32>
    %53 = arith.addf %52, %45 : vector<4x1xf32>
    %54 = arith.addf %53, %47 : vector<4x1xf32>
    %55 = arith.addf %54, %49 : vector<4x1xf32>
    %56 = arith.addf %55, %51 : vector<4x1xf32>
    %57 = tpu.reciprocal %56 {approx = true} : vector<4x1xf32> -> vector<4x1xf32>
    %58 = arith.mulf %2, %57 : vector<4x1xf32>
    %59 = arith.mulf %58, %41 : vector<4x1xf32>
    %c0_13 = arith.constant 0 : index
    %c0_14 = arith.constant 0 : index
    %60 = vector.load %arg12[%c0_13, %c0_14] : memref<4x36xf32, #tpu.memory_space<vmem>>, vector<4x1xf32>
    tpu.vector_store %arg12[%c0_13, %c0_14], %59 {strides = array<i32>} : memref<4x36xf32, #tpu.memory_space<vmem>>, vector<4x1xf32>,
    %61 = arith.mulf %58, %43 : vector<4x1xf32>
    %c0_15 = arith.constant 0 : index
    %c1 = arith.constant 1 : index
    %62 = vector.load %arg12[%c0_15, %c1] : memref<4x36xf32, #tpu.memory_space<vmem>>, vector<4x1xf32>
    tpu.vector_store %arg12[%c0_15, %c1], %61 {strides = array<i32>} : memref<4x36xf32, #tpu.memory_space<vmem>>, vector<4x1xf32>,
    %63 = arith.mulf %58, %45 : vector<4x1xf32>
    %c0_16 = arith.constant 0 : index
    %c2 = arith.constant 2 : index
    %64 = vector.load %arg12[%c0_16, %c2] : memref<4x36xf32, #tpu.memory_space<vmem>>, vector<4x1xf32>
    tpu.vector_store %arg12[%c0_16, %c2], %63 {strides = array<i32>} : memref<4x36xf32, #tpu.memory_space<vmem>>, vector<4x1xf32>,
    %65 = arith.mulf %58, %47 : vector<4x1xf32>
    %c0_17 = arith.constant 0 : index
    %c3 = arith.constant 3 : index
    %66 = vector.load %arg12[%c0_17, %c3] : memref<4x36xf32, #tpu.memory_space<vmem>>, vector<4x1xf32>
    tpu.vector_store %arg12[%c0_17, %c3], %65 {strides = array<i32>} : memref<4x36xf32, #tpu.memory_space<vmem>>, vector<4x1xf32>,
    %67 = arith.mulf %58, %49 : vector<4x1xf32>
    %c0_18 = arith.constant 0 : index
    %c4 = arith.constant 4 : index
    %68 = vector.load %arg12[%c0_18, %c4] : memref<4x36xf32, #tpu.memory_space<vmem>>, vector<4x1xf32>
    tpu.vector_store %arg12[%c0_18, %c4], %67 {strides = array<i32>} : memref<4x36xf32, #tpu.memory_space<vmem>>, vector<4x1xf32>,
    %69 = arith.mulf %58, %51 : vector<4x1xf32>
    %c0_19 = arith.constant 0 : index
    %c5 = arith.constant 5 : index
    %70 = vector.load %arg12[%c0_19, %c5] : memref<4x36xf32, #tpu.memory_space<vmem>>, vector<4x1xf32>
    tpu.vector_store %arg12[%c0_19, %c5], %69 {strides = array<i32>} : memref<4x36xf32, #tpu.memory_space<vmem>>, vector<4x1xf32>,
    %c0_20 = arith.constant 0 : index
    %c0_21 = arith.constant 0 : index
    %71 = vector.load %arg12[%c0_20, %c0_21] : memref<4x36xf32, #tpu.memory_space<vmem>>, vector<4x6xf32>
    %c0_22 = arith.constant 0 : index
    %c0_23 = arith.constant 0 : index
    %72 = vector.load %arg6[%c0_22, %c0_23] : memref<16x36xf32, #tpu.memory_space<vmem>>, vector<16x36xf32>
    %c0_24 = arith.constant 0 : index
    %c0_25 = arith.constant 0 : index
    %73 = vector.load %arg7[%c0_24, %c0_25] : memref<16x108xf32, #tpu.memory_space<vmem>>, vector<16x108xf32>
    %c0_26 = arith.constant 0 : index
    %c0_27 = arith.constant 0 : index
    %74 = vector.load %arg8[%c0_26, %c0_27] : memref<1x36xf32, #tpu.memory_space<vmem>>, vector<1x36xf32>
    %c0_28 = arith.constant 0 : index
    %c0_29 = arith.constant 0 : index
    %75 = vector.load %arg9[%c0_28, %c0_29] : memref<2x36xf32, #tpu.memory_space<vmem>>, vector<2x36xf32>
    %cst_30 = arith.constant dense<0.000000e+00> : vector<4x108xf32>
    %76 = tpu.matmul %0, %73, %cst_30 {dimension_numbers = #tpu.dot_dimension_numbers<[1], [0], [0], [1], [0, 0, 1, 1], [], []>} : vector<4x16xf32>, vector<16x108xf32>, vector<4x108xf32> -> vector<4x108xf32>
    %cst_31 = arith.constant dense<0.000000e+00> : vector<4x36xf32>
    %77 = tpu.matmul %1, %72, %cst_31 {dimension_numbers = #tpu.dot_dimension_numbers<[1], [0], [0], [1], [0, 0, 1, 1], [], []>} : vector<4x16xf32>, vector<16x36xf32>, vector<4x36xf32> -> vector<4x36xf32>
    %78 = vector.extract_strided_slice %76 {offsets = [0, 0], sizes = [4, 36], strides = [1, 1]} : vector<4x108xf32> to vector<4x36xf32>
    %79 = arith.addf %78, %77 : vector<4x36xf32>
    %80 = vector.broadcast %74 : vector<1x36xf32> to vector<4x36xf32>
    %81 = arith.addf %79, %80 : vector<4x36xf32>
    %82 = vector.extract_strided_slice %76 {offsets = [0, 36], sizes = [4, 36], strides = [1, 1]} : vector<4x108xf32> to vector<4x36xf32>
    %83 = vector.extract_strided_slice %75 {offsets = [0, 0], sizes = [1, 36], strides = [1, 1]} : vector<2x36xf32> to vector<1x36xf32>
    %84 = vector.broadcast %83 : vector<1x36xf32> to vector<4x36xf32>
    %85 = arith.subf %82, %84 : vector<4x36xf32>
    %86 = arith.mulf %85, %85 : vector<4x36xf32>
    %cst_32 = arith.constant 5.000000e-01 : f32
    %87 = vector.broadcast %cst_32 : f32 to vector<4x36xf32>
    %88 = arith.mulf %87, %86 : vector<4x36xf32>
    %89 = arith.addf %81, %88 : vector<4x36xf32>
    %90 = vector.extract_strided_slice %76 {offsets = [0, 72], sizes = [4, 36], strides = [1, 1]} : vector<4x108xf32> to vector<4x36xf32>
    %91 = vector.extract_strided_slice %75 {offsets = [1, 0], sizes = [1, 36], strides = [1, 1]} : vector<2x36xf32> to vector<1x36xf32>
    %92 = vector.broadcast %91 : vector<1x36xf32> to vector<4x36xf32>
    %93 = arith.subf %90, %92 : vector<4x36xf32>
    %94 = arith.mulf %93, %93 : vector<4x36xf32>
    %cst_33 = arith.constant 5.000000e-01 : f32
    %95 = vector.broadcast %cst_33 : f32 to vector<4x36xf32>
    %96 = arith.mulf %95, %94 : vector<4x36xf32>
    %97 = arith.addf %89, %96 : vector<4x36xf32>
    %98 = vector.extract_strided_slice %97 {offsets = [0, 0], sizes = [4, 6], strides = [1, 1]} : vector<4x36xf32> to vector<4x6xf32>
    %99 = vector.extract_strided_slice %97 {offsets = [0, 6], sizes = [4, 6], strides = [1, 1]} : vector<4x36xf32> to vector<4x6xf32>
    %100 = vector.extract_strided_slice %97 {offsets = [0, 12], sizes = [4, 6], strides = [1, 1]} : vector<4x36xf32> to vector<4x6xf32>
    %101 = vector.extract_strided_slice %97 {offsets = [0, 18], sizes = [4, 6], strides = [1, 1]} : vector<4x36xf32> to vector<4x6xf32>
    %102 = vector.extract_strided_slice %97 {offsets = [0, 24], sizes = [4, 6], strides = [1, 1]} : vector<4x36xf32> to vector<4x6xf32>
    %103 = vector.extract_strided_slice %97 {offsets = [0, 30], sizes = [4, 6], strides = [1, 1]} : vector<4x36xf32> to vector<4x6xf32>
    %104 = arith.maximumf %98, %99 : vector<4x6xf32>
    %105 = arith.maximumf %104, %100 : vector<4x6xf32>
    %106 = arith.maximumf %105, %101 : vector<4x6xf32>
    %107 = arith.maximumf %106, %102 : vector<4x6xf32>
    %108 = arith.maximumf %107, %103 : vector<4x6xf32>
    %109 = arith.subf %98, %108 : vector<4x6xf32>
    %110 = math.exp %109 : vector<4x6xf32>
    %111 = arith.subf %99, %108 : vector<4x6xf32>
    %112 = math.exp %111 : vector<4x6xf32>
    %113 = arith.subf %100, %108 : vector<4x6xf32>
    %114 = math.exp %113 : vector<4x6xf32>
    %115 = arith.subf %101, %108 : vector<4x6xf32>
    %116 = math.exp %115 : vector<4x6xf32>
    %117 = arith.subf %102, %108 : vector<4x6xf32>
    %118 = math.exp %117 : vector<4x6xf32>
    %119 = arith.subf %103, %108 : vector<4x6xf32>
    %120 = math.exp %119 : vector<4x6xf32>
    %121 = arith.addf %110, %112 : vector<4x6xf32>
    %122 = arith.addf %121, %114 : vector<4x6xf32>
    %123 = arith.addf %122, %116 : vector<4x6xf32>
    %124 = arith.addf %123, %118 : vector<4x6xf32>
    %125 = arith.addf %124, %120 : vector<4x6xf32>
    %126 = tpu.reciprocal %125 {approx = true} : vector<4x6xf32> -> vector<4x6xf32>
    %127 = arith.mulf %71, %126 : vector<4x6xf32>
    %128 = arith.mulf %127, %110 : vector<4x6xf32>
    %c0_34 = arith.constant 0 : index
    %c0_35 = arith.constant 0 : index
    %129 = vector.load %arg12[%c0_34, %c0_35] : memref<4x36xf32, #tpu.memory_space<vmem>>, vector<4x6xf32>
    tpu.vector_store %arg12[%c0_34, %c0_35], %128 {strides = array<i32>} : memref<4x36xf32, #tpu.memory_space<vmem>>, vector<4x6xf32>,
    %130 = arith.mulf %127, %112 : vector<4x6xf32>
    %c0_36 = arith.constant 0 : index
    %c6 = arith.constant 6 : index
    %131 = vector.load %arg12[%c0_36, %c6] : memref<4x36xf32, #tpu.memory_space<vmem>>, vector<4x6xf32>
    tpu.vector_store %arg12[%c0_36, %c6], %130 {strides = array<i32>} : memref<4x36xf32, #tpu.memory_space<vmem>>, vector<4x6xf32>,
    %132 = arith.mulf %127, %114 : vector<4x6xf32>
    %c0_37 = arith.constant 0 : index
    %c12 = arith.constant 12 : index
    %133 = vector.load %arg12[%c0_37, %c12] : memref<4x36xf32, #tpu.memory_space<vmem>>, vector<4x6xf32>
    tpu.vector_store %arg12[%c0_37, %c12], %132 {strides = array<i32>} : memref<4x36xf32, #tpu.memory_space<vmem>>, vector<4x6xf32>,
    %134 = arith.mulf %127, %116 : vector<4x6xf32>
    %c0_38 = arith.constant 0 : index
    %c18 = arith.constant 18 : index
    %135 = vector.load %arg12[%c0_38, %c18] : memref<4x36xf32, #tpu.memory_space<vmem>>, vector<4x6xf32>
    tpu.vector_store %arg12[%c0_38, %c18], %134 {strides = array<i32>} : memref<4x36xf32, #tpu.memory_space<vmem>>, vector<4x6xf32>,
    %136 = arith.mulf %127, %118 : vector<4x6xf32>
    %c0_39 = arith.constant 0 : index
    %c24 = arith.constant 24 : index
    %137 = vector.load %arg12[%c0_39, %c24] : memref<4x36xf32, #tpu.memory_space<vmem>>, vector<4x6xf32>
    tpu.vector_store %arg12[%c0_39, %c24], %136 {strides = array<i32>} : memref<4x36xf32, #tpu.memory_space<vmem>>, vector<4x6xf32>,
    %138 = arith.mulf %127, %120 : vector<4x6xf32>
    %c0_40 = arith.constant 0 : index
    %c30 = arith.constant 30 : index
    %139 = vector.load %arg12[%c0_40, %c30] : memref<4x36xf32, #tpu.memory_space<vmem>>, vector<4x6xf32>
    tpu.vector_store %arg12[%c0_40, %c30], %138 {strides = array<i32>} : memref<4x36xf32, #tpu.memory_space<vmem>>, vector<4x6xf32>,
    %c0_41 = arith.constant 0 : index
    %c0_42 = arith.constant 0 : index
    %140 = vector.load %arg12[%c0_41, %c0_42] : memref<4x36xf32, #tpu.memory_space<vmem>>, vector<4x36xf32>
    %cst_43 = arith.constant dense<0xFF800000> : vector<4xf32>
    %141 = vector.multi_reduction <maximumf>, %140, %cst_43 [1] : vector<4x36xf32> to vector<4xf32>
    %142 = vector.shape_cast %141 : vector<4xf32> to vector<4x1xf32>
    %143 = tpu.iota {dimensions = array<i32: 1>} : vector<4x36xi32>
    %144 = vector.broadcast %142 : vector<4x1xf32> to vector<4x36xf32>
    %145 = arith.cmpf oeq, %140, %144 : vector<4x36xf32>
    %c36_i32 = arith.constant 36 : i32
    %146 = vector.broadcast %c36_i32 : i32 to vector<4x36xi32>
    %147 = arith.select %145, %143, %146 : vector<4x36xi1>, vector<4x36xi32>
    %cst_44 = arith.constant dense<2147483647> : vector<4xi32>
    %148 = vector.multi_reduction <minsi>, %147, %cst_44 [1] : vector<4x36xi32> to vector<4xi32>
    %149 = vector.shape_cast %148 : vector<4xi32> to vector<4x1xi32>
    %150 = vector.broadcast %149 : vector<4x1xi32> to vector<4x36xi32>
    %151 = arith.cmpi eq, %143, %150 : vector<4x36xi32>
    %152 = arith.extui %151 : vector<4x36xi1> to vector<4x36xi32>
    %153 = arith.sitofp %152 : vector<4x36xi32> to vector<4x36xf32>
    %c0_45 = arith.constant 0 : index
    %c0_46 = arith.constant 0 : index
    %154 = vector.load %arg10[%c0_45, %c0_46] : memref<5x36xf32, #tpu.memory_space<vmem>>, vector<5x36xf32>
    %155 = vector.extract_strided_slice %154 {offsets = [0, 0], sizes = [1, 36], strides = [1, 1]} : vector<5x36xf32> to vector<1x36xf32>
    %156 = vector.broadcast %155 : vector<1x36xf32> to vector<4x36xf32>
    %157 = arith.mulf %153, %156 : vector<4x36xf32>
    %cst_47 = arith.constant dense<0.000000e+00> : vector<4xf32>
    %158 = vector.multi_reduction <add>, %157, %cst_47 [1] : vector<4x36xf32> to vector<4xf32>
    %159 = vector.shape_cast %158 : vector<4xf32> to vector<4x1xf32>
    %c0_48 = arith.constant 0 : index
    %c0_49 = arith.constant 0 : index
    %160 = vector.load %arg11[%c0_48, %c0_49] : memref<4x5xf32, #tpu.memory_space<vmem>>, vector<4x1xf32>
    tpu.vector_store %arg11[%c0_48, %c0_49], %159 {strides = array<i32>} : memref<4x5xf32, #tpu.memory_space<vmem>>, vector<4x1xf32>,
    %161 = vector.extract_strided_slice %154 {offsets = [1, 0], sizes = [1, 36], strides = [1, 1]} : vector<5x36xf32> to vector<1x36xf32>
    %162 = vector.broadcast %161 : vector<1x36xf32> to vector<4x36xf32>
    %163 = arith.mulf %153, %162 : vector<4x36xf32>
    %cst_50 = arith.constant dense<0.000000e+00> : vector<4xf32>
    %164 = vector.multi_reduction <add>, %163, %cst_50 [1] : vector<4x36xf32> to vector<4xf32>
    %165 = vector.shape_cast %164 : vector<4xf32> to vector<4x1xf32>
    %c0_51 = arith.constant 0 : index
    %c1_52 = arith.constant 1 : index
    %166 = vector.load %arg11[%c0_51, %c1_52] : memref<4x5xf32, #tpu.memory_space<vmem>>, vector<4x1xf32>
    tpu.vector_store %arg11[%c0_51, %c1_52], %165 {strides = array<i32>} : memref<4x5xf32, #tpu.memory_space<vmem>>, vector<4x1xf32>,
    %167 = vector.extract_strided_slice %154 {offsets = [2, 0], sizes = [1, 36], strides = [1, 1]} : vector<5x36xf32> to vector<1x36xf32>
    %168 = vector.broadcast %167 : vector<1x36xf32> to vector<4x36xf32>
    %169 = arith.mulf %153, %168 : vector<4x36xf32>
    %cst_53 = arith.constant dense<0.000000e+00> : vector<4xf32>
    %170 = vector.multi_reduction <add>, %169, %cst_53 [1] : vector<4x36xf32> to vector<4xf32>
    %171 = vector.shape_cast %170 : vector<4xf32> to vector<4x1xf32>
    %c0_54 = arith.constant 0 : index
    %c2_55 = arith.constant 2 : index
    %172 = vector.load %arg11[%c0_54, %c2_55] : memref<4x5xf32, #tpu.memory_space<vmem>>, vector<4x1xf32>
    tpu.vector_store %arg11[%c0_54, %c2_55], %171 {strides = array<i32>} : memref<4x5xf32, #tpu.memory_space<vmem>>, vector<4x1xf32>,
    %173 = vector.extract_strided_slice %154 {offsets = [3, 0], sizes = [1, 36], strides = [1, 1]} : vector<5x36xf32> to vector<1x36xf32>
    %174 = vector.broadcast %173 : vector<1x36xf32> to vector<4x36xf32>
    %175 = arith.mulf %153, %174 : vector<4x36xf32>
    %cst_56 = arith.constant dense<0.000000e+00> : vector<4xf32>
    %176 = vector.multi_reduction <add>, %175, %cst_56 [1] : vector<4x36xf32> to vector<4xf32>
    %177 = vector.shape_cast %176 : vector<4xf32> to vector<4x1xf32>
    %c0_57 = arith.constant 0 : index
    %c3_58 = arith.constant 3 : index
    %178 = vector.load %arg11[%c0_57, %c3_58] : memref<4x5xf32, #tpu.memory_space<vmem>>, vector<4x1xf32>
    tpu.vector_store %arg11[%c0_57, %c3_58], %177 {strides = array<i32>} : memref<4x5xf32, #tpu.memory_space<vmem>>, vector<4x1xf32>,
    %179 = vector.extract_strided_slice %154 {offsets = [4, 0], sizes = [1, 36], strides = [1, 1]} : vector<5x36xf32> to vector<1x36xf32>
    %180 = vector.broadcast %179 : vector<1x36xf32> to vector<4x36xf32>
    %181 = arith.mulf %153, %180 : vector<4x36xf32>
    %cst_59 = arith.constant dense<0.000000e+00> : vector<4xf32>
    %182 = vector.multi_reduction <add>, %181, %cst_59 [1] : vector<4x36xf32> to vector<4xf32>
    %183 = vector.shape_cast %182 : vector<4xf32> to vector<4x1xf32>
    %c0_60 = arith.constant 0 : index
    %c4_61 = arith.constant 4 : index
    %184 = vector.load %arg11[%c0_60, %c4_61] : memref<4x5xf32, #tpu.memory_space<vmem>>, vector<4x1xf32>
    tpu.vector_store %arg11[%c0_60, %c4_61], %183 {strides = array<i32>} : memref<4x5xf32, #tpu.memory_space<vmem>>, vector<4x1xf32>,
    return
  }
  func.func @transform_0(%arg0: i32) -> (i32, i32) {
    %c0_i32 = arith.constant 0 : i32
    %c0_i32_0 = arith.constant 0 : i32
    return %arg0, %c0_i32 : i32, i32
  }
  func.func @transform_1(%arg0: i32) -> (i32, i32) {
    %c0_i32 = arith.constant 0 : i32
    %c0_i32_0 = arith.constant 0 : i32
    %c0_i32_1 = arith.constant 0 : i32
    return %c0_i32, %c0_i32_0 : i32, i32
  }
  func.func @transform_2(%arg0: i32) -> (i32, i32) {
    %c0_i32 = arith.constant 0 : i32
    %c0_i32_0 = arith.constant 0 : i32
    %c0_i32_1 = arith.constant 0 : i32
    return %c0_i32, %c0_i32_0 : i32, i32
  }
  func.func @transform_3(%arg0: i32) -> (i32, i32) {
    %c0_i32 = arith.constant 0 : i32
    %c0_i32_0 = arith.constant 0 : i32
    %c0_i32_1 = arith.constant 0 : i32
    return %c0_i32, %c0_i32_0 : i32, i32
  }
  func.func @transform_4(%arg0: i32) -> (i32, i32) {
    %c0_i32 = arith.constant 0 : i32
    %c0_i32_0 = arith.constant 0 : i32
    %c0_i32_1 = arith.constant 0 : i32
    return %c0_i32, %c0_i32_0 : i32, i32
  }
  func.func @transform_5(%arg0: i32) -> (i32, i32) {
    %c0_i32 = arith.constant 0 : i32
    %c0_i32_0 = arith.constant 0 : i32
    %c0_i32_1 = arith.constant 0 : i32
    return %c0_i32, %c0_i32_0 : i32, i32
  }
  func.func @transform_6(%arg0: i32) -> (i32, i32) {
    %c0_i32 = arith.constant 0 : i32
    %c0_i32_0 = arith.constant 0 : i32
    %c0_i32_1 = arith.constant 0 : i32
    return %c0_i32, %c0_i32_0 : i32, i32
  }
  func.func @transform_7(%arg0: i32) -> (i32, i32) {
    %c0_i32 = arith.constant 0 : i32
    %c0_i32_0 = arith.constant 0 : i32
    %c0_i32_1 = arith.constant 0 : i32
    return %c0_i32, %c0_i32_0 : i32, i32
  }
  func.func @transform_8(%arg0: i32) -> (i32, i32) {
    %c0_i32 = arith.constant 0 : i32
    %c0_i32_0 = arith.constant 0 : i32
    %c0_i32_1 = arith.constant 0 : i32
    return %c0_i32, %c0_i32_0 : i32, i32
  }
  func.func @transform_9(%arg0: i32) -> (i32, i32) {
    %c0_i32 = arith.constant 0 : i32
    %c0_i32_0 = arith.constant 0 : i32
    %c0_i32_1 = arith.constant 0 : i32
    return %c0_i32, %c0_i32_0 : i32, i32
  }
  func.func @transform_10(%arg0: i32) -> (i32, i32) {
    %c0_i32 = arith.constant 0 : i32
    %c0_i32_0 = arith.constant 0 : i32
    return %arg0, %c0_i32 : i32, i32
  }
}

</mosaic_0001>

<llo_original>
// kernel: tpu_custom_call.1
$region0: #{tpu_custom_call.1}
  #allocation0 [shape = 'u32[]', space=smem, size = 0x4, offset = 0x4, fixed_abs, tag = 'smem constant byte address 0x4 - core index']
  #allocation1 [shape = 'u32[144,128]{1,0:T(1,128)}', space=vmem, size = 0x12000, scoped, tag = 'internal scratch']
  #allocation2 [shape = 'f32[4,36]{1,0:T(4,128)}', space=vmem, size = 0x800, scoped, tag = 'scratch operand']
  %s0 = inlined_call_operand.hbm [shape: f32[4,16], index: 0, kind: input, shape index: {}]
  %s1 = inlined_call_operand.vmem [shape: f32[16,6], index: 1, kind: input, shape index: {}]
  %s2 = inlined_call_operand.vmem [shape: f32[16,18], index: 2, kind: input, shape index: {}]
  %s3 = inlined_call_operand.hbm [shape: f32[1,6], index: 3, kind: input, shape index: {}]
  %s4 = inlined_call_operand.vmem [shape: f32[2,6], index: 4, kind: input, shape index: {}]
  %s5 = inlined_call_operand.vmem [shape: f32[16,36], index: 5, kind: input, shape index: {}]
  %s6 = inlined_call_operand.hbm [shape: f32[16,108], index: 6, kind: input, shape index: {}]
  %s7 = inlined_call_operand.vmem [shape: f32[1,36], index: 7, kind: input, shape index: {}]
  %s8 = inlined_call_operand.vmem [shape: f32[2,36], index: 8, kind: input, shape index: {}]
  %s9 = inlined_call_operand.vmem [shape: f32[5,36], index: 9, kind: input, shape index: {}]
  %s10 = inlined_call_operand.hbm [shape: f32[4,5], index: 10, kind: output, shape index: {}]
  %s11 = sld [smem:[#allocation0]]
  $region62: #{tpu_custom_call.1} parent=0
    _
  %s13 = ssub.s32 1, %s11
  %s14 = scalar_select 0, %s13, %s11
  $region1: #{tpu_custom_call.1} parent=0
    #allocation3 [shape = 'u8[2048]{0}', space=vmem, size = 0x800, scoped, tag = 'input window, operand 0, single buffered']
    #allocation4 [shape = 's32[1]{0}', space=sflag, size = 0x4, scoped, tag = 'scoped memory for tpu_custom_call.1']
    #allocation5 [shape = 's32[1]{0}', space=sflag, size = 0x4, scoped, tag = 'scoped memory for tpu_custom_call.1']
    #allocation6 [shape = 'u8[512]{0}', space=vmem, size = 0x400, scoped, tag = 'input window, operand 3, single buffered']
    #allocation7 [shape = 's32[1]{0}', space=sflag, size = 0x4, scoped, tag = 'scoped memory for tpu_custom_call.1']
    #allocation8 [shape = 'u8[8192]{0}', space=vmem, size = 0x2000, scoped, tag = 'input window, operand 6, single buffered']
    #allocation9 [shape = 'u8[2048]{0}', space=vmem, size = 0x800, scoped, tag = 'output window, operand 0, single buffered']
    %15 = vsyncpa [#allocation4], 0
    %16 = vsyncpa [#allocation7], 0
    %17 = vsyncpa [#allocation5], 0
    // Predicated region
    $region2: #{tpu_custom_call.1} parent=1 // pred_check
      _
    $region3: #{tpu_custom_call.1} parent=1 // pred_check_branch
      %19 = sbr.rel (0) target = $region5
    $region4: #{tpu_custom_call.1} parent=1 // pred_region
      %s21 = ssub.s32 64, 64
      %22 = vsyncadd [#allocation4], %s21
      %s24 = sshll.u32 [#allocation3], 4
      %s25 = int_to_ptr.vmem [resolvable:$true] %s24
      %27 = dma.hbm_to_vmem [thread:$0]  %s0, 64, %s25, [#allocation4]
    $region5: #{tpu_custom_call.1} parent=1 // pred_fallthru
      _
    // Predicated region
    $region6: #{tpu_custom_call.1} parent=1 // pred_check
      _
    $region7: #{tpu_custom_call.1} parent=1 // pred_check_branch
      %29 = sbr.rel (0) target = $region9
    $region8: #{tpu_custom_call.1} parent=1 // pred_region
      _
    $region9: #{tpu_custom_call.1} parent=1 // pred_fallthru
      _
    // Predicated region
    $region10: #{tpu_custom_call.1} parent=1 // pred_check
      _
    $region11: #{tpu_custom_call.1} parent=1 // pred_check_branch
      %31 = sbr.rel (0) target = $region13
    $region12: #{tpu_custom_call.1} parent=1 // pred_region
      _
    $region13: #{tpu_custom_call.1} parent=1 // pred_fallthru
      _
    // Predicated region
    $region14: #{tpu_custom_call.1} parent=1 // pred_check
      _
    $region15: #{tpu_custom_call.1} parent=1 // pred_check_branch
      %33 = sbr.rel (0) target = $region17
    $region16: #{tpu_custom_call.1} parent=1 // pred_region
      %s35 = ssub.s32 16, 16
      %36 = vsyncadd [#allocation7], %s35
      %s38 = sshll.u32 [#allocation6], 4
      %s39 = int_to_ptr.vmem [resolvable:$true] %s38
      %41 = dma.hbm_to_vmem [thread:$0]  %s3, 16, %s39, [#allocation7]
    $region17: #{tpu_custom_call.1} parent=1 // pred_fallthru
      _
    // Predicated region
    $region18: #{tpu_custom_call.1} parent=1 // pred_check
      _
    $region19: #{tpu_custom_call.1} parent=1 // pred_check_branch
      %43 = sbr.rel (0) target = $region21
    $region20: #{tpu_custom_call.1} parent=1 // pred_region
      _
    $region21: #{tpu_custom_call.1} parent=1 // pred_fallthru
      _
    // Predicated region
    $region22: #{tpu_custom_call.1} parent=1 // pred_check
      _
    $region23: #{tpu_custom_call.1} parent=1 // pred_check_branch
      %45 = sbr.rel (0) target = $region25
    $region24: #{tpu_custom_call.1} parent=1 // pred_region
      _
    $region25: #{tpu_custom_call.1} parent=1 // pred_fallthru
      _
    // Predicated region
    $region26: #{tpu_custom_call.1} parent=1 // pred_check
      _
    $region27: #{tpu_custom_call.1} parent=1 // pred_check_branch
      %47 = sbr.rel (0) target = $region29
    $region28: #{tpu_custom_call.1} parent=1 // pred_region
      %s49 = ssub.s32 256, 256
      %50 = vsyncadd [#allocation7], %s49
      %s51 = sshll.u32 [#allocation8], 4
      %s52 = int_to_ptr.vmem [resolvable:$true] %s51
      %57 = dma.hbm_to_vmem [thread:$0]  %s6, 256, %s52, [#allocation7], 128, 128, 8
    $region29: #{tpu_custom_call.1} parent=1 // pred_fallthru
      _
    // Predicated region
    $region30: #{tpu_custom_call.1} parent=1 // pred_check
      _
    $region31: #{tpu_custom_call.1} parent=1 // pred_check_branch
      %59 = sbr.rel (0) target = $region33
    $region32: #{tpu_custom_call.1} parent=1 // pred_region
      _
    $region33: #{tpu_custom_call.1} parent=1 // pred_fallthru
      _
    // Predicated region
    $region34: #{tpu_custom_call.1} parent=1 // pred_check
      _
    $region35: #{tpu_custom_call.1} parent=1 // pred_check_branch
      %61 = sbr.rel (0) target = $region37
    $region36: #{tpu_custom_call.1} parent=1 // pred_region
      _
    $region37: #{tpu_custom_call.1} parent=1 // pred_fallthru
      _
    // Predicated region
    $region38: #{tpu_custom_call.1} parent=1 // pred_check
      _
    $region39: #{tpu_custom_call.1} parent=1 // pred_check_branch
      %63 = sbr.rel (0) target = $region41
    $region40: #{tpu_custom_call.1} parent=1 // pred_region
      _
    $region41: #{tpu_custom_call.1} parent=1 // pred_fallthru
      _
    // Predicated region
    $region42: #{tpu_custom_call.1} parent=1 // pred_check
      _
    $region43: #{tpu_custom_call.1} parent=1 // pred_check_branch
      %65 = sbr.rel (0) target = $region45
    $region44: #{tpu_custom_call.1} parent=1 // pred_region
      %66 = dma.done [#allocation4], 64
    $region45: #{tpu_custom_call.1} parent=1 // pred_fallthru
      _
    // Predicated region
    $region46: #{tpu_custom_call.1} parent=1 // pred_check
      _
    $region47: #{tpu_custom_call.1} parent=1 // pred_check_branch
      %68 = sbr.rel (0) target = $region49
    $region48: #{tpu_custom_call.1} parent=1 // pred_region
      %69 = dma.done [#allocation7], 16
    $region49: #{tpu_custom_call.1} parent=1 // pred_fallthru
      _
    // Predicated region
    $region50: #{tpu_custom_call.1} parent=1 // pred_check
      _
    $region51: #{tpu_custom_call.1} parent=1 // pred_check_branch
      %71 = sbr.rel (0) target = $region53
    $region52: #{tpu_custom_call.1} parent=1 // pred_region
      %72 = dma.done [#allocation7], 256
    $region53: #{tpu_custom_call.1} parent=1 // pred_fallthru
      _
    %v73 = vld [vmem:[#allocation3] sm:$0xf]
    %v74 = vmul.f32 %v73, %v73
    %v75 = vld [vmem:[%s1] sm:$0xff]
    %v76 = vld [vmem:[%s1 + $0x8] sm:$0xff]
    %v77 = vld [vmem:[%s2] sm:$0xff]
    %v78 = vld [vmem:[%s2 + $0x8] sm:$0xff]
    %v79 = vld [vmem:[#allocation6] sm:$0x1]
    %v80 = vld [vmem:[%s4] sm:$0x3]
    %vm81 = vcmask 130048
    %v83 = vsel %vm81, %v73, 0
    %85 = vmatprep.subr.mxu0 0.0
    %86 = vmatpush1.msra.mxu0 %v77
    %87 = vmatprep.subr.mxu0 0.0
    %88 = vmatpush1.msra.mxu0 %v78
    %89 = vmatprep.subr.mxu0 0.0
    %90 = vmatpush1.msra.mxu0 0.0
    %91 = vmatprep.subr.mxu0 0.0
    %92 = vmatpush1.msra.mxu0 0.0
    %93 = vmatprep.subr.mxu0 0.0
    %94 = vmatpush1.msra.mxu0 0.0
    %95 = vmatprep.subr.mxu0 0.0
    %96 = vmatpush1.msra.mxu0 0.0
    %97 = vmatprep.subr.mxu0 0.0
    %98 = vmatpush1.msra.mxu0 0.0
    %99 = vmatprep.subr.mxu0 0.0
    %100 = vmatpush1.msra.mxu0 0.0
    %101 = vmatprep.subr.mxu0 0.0
    %102 = vmatpush1.msra.mxu0 0.0
    %103 = vmatprep.subr.mxu0 0.0
    %104 = vmatpush1.msra.mxu0 0.0
    %105 = vmatprep.subr.mxu0 0.0
    %106 = vmatpush1.msra.mxu0 0.0
    %107 = vmatprep.subr.mxu0 0.0
    %108 = vmatpush1.msra.mxu0 0.0
    %109 = vmatprep.subr.mxu0 0.0
    %110 = vmatpush1.msra.mxu0 0.0
    %111 = vmatprep.subr.mxu0 0.0
    %112 = vmatpush1.msra.mxu0 0.0
    %113 = vmatprep.subr.mxu0 0.0
    %114 = vmatpush1.msra.mxu0 0.0
    %115 = vmatprep.subr.mxu0 0.0
    %116 = vmatpush1.msra.mxu0 0.0
    %117 = vmatprep.subr.mxu0 0.0
    %118 = vmatpush1.msra.mxu0 0.0
    %119 = vmatprep.subr.mxu0 0.0
    %120 = vmatpush1.msra.mxu0 0.0
    %121 = vmatprep.subr.mxu0 0.0
    %122 = vmatpush1.msra.mxu0 0.0
    %123 = vmatprep.subr.mxu0 0.0
    %124 = vmatpush1.msra.mxu0 0.0
    %125 = vmatprep.subr.mxu0 0.0
    %126 = vmatpush1.msra.mxu0 0.0
    %127 = vmatprep.subr.mxu0 0.0
    %128 = vmatpush1.msra.mxu0 0.0
    %129 = vmatprep.subr.mxu0 0.0
    %130 = vmatpush1.msra.mxu0 0.0
    %131 = vmatprep.subr.mxu0 0.0
    %132 = vmatpush1.msra.mxu0 0.0
    %133 = vmatprep.subr.mxu0 0.0
    %134 = vmatpush1.msra.mxu0 0.0
    %135 = vmatprep.subr.mxu0 0.0
    %136 = vmatpush1.msra.mxu0 0.0
    %137 = vmatprep.subr.mxu0 0.0
    %138 = vmatpush1.msra.mxu0 0.0
    %139 = vmatprep.subr.mxu0 0.0
    %140 = vmatpush1.msra.mxu0 0.0
    %141 = vmatprep.subr.mxu0 0.0
    %142 = vmatpush1.msra.mxu0 0.0
    %143 = vmatprep.subr.mxu0 0.0
    %144 = vmatpush1.msra.mxu0 0.0
    %145 = vmatprep.subr.mxu0 0.0
    %146 = vmatpush1.msra.mxu0 0.0
    %147 = vmatprep.subr.mxu0 0.0
    %148 = vmatpush1.msra.mxu0 0.0
    %149 = vmatprep.mubr.f32.mxu0 0.0
    %150 = vmatmul.mubr.f32.gmra.mrb[0].mxu0 %v83
    %v151 = vpop.f32.mrb[0].mxu0
    %v152 = vadd.f32 0.0, %v151
    %v153 = vpop.f32.mrb[0].mxu0
    %154 = vdwg.mxu0
    %v156 = vsel %vm81, %v74, 0
    %158 = vmatprep.subr.mxu0 0.0
    %159 = vmatpush1.msra.mxu0 %v75
    %160 = vmatprep.subr.mxu0 0.0
    %161 = vmatpush1.msra.mxu0 %v76
    %162 = vmatprep.subr.mxu0 0.0
    %163 = vmatpush1.msra.mxu0 0.0
    %164 = vmatprep.subr.mxu0 0.0
    %165 = vmatpush1.msra.mxu0 0.0
    %166 = vmatprep.subr.mxu0 0.0
    %167 = vmatpush1.msra.mxu0 0.0
    %168 = vmatprep.subr.mxu0 0.0
    %169 = vmatpush1.msra.mxu0 0.0
    %170 = vmatprep.subr.mxu0 0.0
    %171 = vmatpush1.msra.mxu0 0.0
    %172 = vmatprep.subr.mxu0 0.0
    %173 = vmatpush1.msra.mxu0 0.0
    %174 = vmatprep.subr.mxu0 0.0
    %175 = vmatpush1.msra.mxu0 0.0
    %176 = vmatprep.subr.mxu0 0.0
    %177 = vmatpush1.msra.mxu0 0.0
    %178 = vmatprep.subr.mxu0 0.0
    %179 = vmatpush1.msra.mxu0 0.0
    %180 = vmatprep.subr.mxu0 0.0
    %181 = vmatpush1.msra.mxu0 0.0
    %182 = vmatprep.subr.mxu0 0.0
    %183 = vmatpush1.msra.mxu0 0.0
    %184 = vmatprep.subr.mxu0 0.0
    %185 = vmatpush1.msra.mxu0 0.0
    %186 = vmatprep.subr.mxu0 0.0
    %187 = vmatpush1.msra.mxu0 0.0
    %188 = vmatprep.subr.mxu0 0.0
    %189 = vmatpush1.msra.mxu0 0.0
    %190 = vmatprep.subr.mxu0 0.0
    %191 = vmatpush1.msra.mxu0 0.0
    %192 = vmatprep.subr.mxu0 0.0
    %193 = vmatpush1.msra.mxu0 0.0
    %194 = vmatprep.subr.mxu0 0.0
    %195 = vmatpush1.msra.mxu0 0.0
    %196 = vmatprep.subr.mxu0 0.0
    %197 = vmatpush1.msra.mxu0 0.0
    %198 = vmatprep.subr.mxu0 0.0
    %199 = vmatpush1.msra.mxu0 0.0
    %200 = vmatprep.subr.mxu0 0.0
    %201 = vmatpush1.msra.mxu0 0.0
    %202 = vmatprep.subr.mxu0 0.0
    %203 = vmatpush1.msra.mxu0 0.0
    %204 = vmatprep.subr.mxu0 0.0
    %205 = vmatpush1.msra.mxu0 0.0
    %206 = vmatprep.subr.mxu0 0.0
    %207 = vmatpush1.msra.mxu0 0.0
    %208 = vmatprep.subr.mxu0 0.0
    %209 = vmatpush1.msra.mxu0 0.0
    %210 = vmatprep.subr.mxu0 0.0
    %211 = vmatpush1.msra.mxu0 0.0
    %212 = vmatprep.subr.mxu0 0.0
    %213 = vmatpush1.msra.mxu0 0.0
    %214 = vmatprep.subr.mxu0 0.0
    %215 = vmatpush1.msra.mxu0 0.0
    %216 = vmatprep.subr.mxu0 0.0
    %217 = vmatpush1.msra.mxu0 0.0
    %218 = vmatprep.subr.mxu0 0.0
    %219 = vmatpush1.msra.mxu0 0.0
    %220 = vmatprep.subr.mxu0 0.0
    %221 = vmatpush1.msra.mxu0 0.0
    %222 = vmatprep.mubr.f32.mxu0 0.0
    %223 = vmatmul.mubr.f32.gmra.mrb[0].mxu0 %v156
    %v224 = vpop.f32.mrb[0].mxu0
    %v225 = vadd.f32 0.0, %v224
    %v226 = vpop.f32.mrb[0].mxu0
    %227 = vdwg.mxu0
    %v228 = vadd.f32 %v152, %v225
    %v230 = vlaneseq
    %v231 = vshrl.u32 %v230, 7
    %v232 = vsub.s32 0, %v231
    %v233 = vrot.slane %v79, %v232
    %v235 = vadd.f32 %v228, %v233
    %v236 = vlaneseq
    %v237 = vshrl.u32 %v236, 7
    %v238 = vsub.s32 0, %v237
    %v239 = vrot.slane %v80, %v238
    %241 = vrot.lane.b32.xlu0 %v239, 6
    %v242 = vpop.permute.xlu0 %241
    %v244 = vsub.f32 %v152, %v242
    %v245 = vmul.f32 %v244, %v244
    %v246 = vmul.f32 %v245, 0.5
    %248 = vrot.lane.b32.xlu0 %v246, 122
    %v249 = vpop.permute.xlu0 %248
    %v251 = vadd.f32 %v235, %v249
    %v252 = vlaneseq
    %v253 = vshrl.u32 %v252, 7
    %v254 = vsub.s32 1, %v253
    %v255 = vrot.slane %v80, %v254
    %257 = vrot.lane.b32.xlu0 %v255, 12
    %v258 = vpop.permute.xlu0 %257
    %v260 = vsub.f32 %v152, %v258
    %v261 = vmul.f32 %v260, %v260
    %v262 = vmul.f32 %v261, 0.5
    %264 = vrot.lane.b32.xlu0 %v262, 116
    %v265 = vpop.permute.xlu0 %264
    %v267 = vadd.f32 %v251, %v265
    %269 = vrot.lane.b32.xlu0 %v267, 127
    %v270 = vpop.permute.xlu0 %269
    %v272 = vmax.f32 %v267, %v270
    %273 = vrot.lane.b32.xlu0 %v267, 126
    %v274 = vpop.permute.xlu0 %273
    %v276 = vmax.f32 %v272, %v274
    %277 = vrot.lane.b32.xlu0 %v267, 125
    %v278 = vpop.permute.xlu0 %277
    %v280 = vmax.f32 %v276, %v278
    %281 = vrot.lane.b32.xlu0 %v267, 124
    %v282 = vpop.permute.xlu0 %281
    %v284 = vmax.f32 %v280, %v282
    %285 = vrot.lane.b32.xlu0 %v267, 123
    %v286 = vpop.permute.xlu0 %285
    %v288 = vmax.f32 %v284, %v286
    %v289 = vsub.f32 %v267, %v288
    %v290 = vmul.f32 %v289, 1.442695
    %v291 = vpow.pop %v290
    %293 = vrot.lane.b32.xlu0 %v288, 1
    %v294 = vpop.permute.xlu0 %293
    %v296 = vsub.f32 %v267, %v294
    %v297 = vmul.f32 %v296, 1.442695
    %v298 = vpow.pop %v297
    %299 = vrot.lane.b32.xlu0 %v288, 2
    %v300 = vpop.permute.xlu0 %299
    %v302 = vsub.f32 %v267, %v300
    %v303 = vmul.f32 %v302, 1.442695
    %v304 = vpow.pop %v303
    %305 = vrot.lane.b32.xlu0 %v288, 3
    %v306 = vpop.permute.xlu0 %305
    %v308 = vsub.f32 %v267, %v306
    %v309 = vmul.f32 %v308, 1.442695
    %v310 = vpow.pop %v309
    %311 = vrot.lane.b32.xlu0 %v288, 4
    %v312 = vpop.permute.xlu0 %311
    %v314 = vsub.f32 %v267, %v312
    %v315 = vmul.f32 %v314, 1.442695
    %v316 = vpow.pop %v315
    %317 = vrot.lane.b32.xlu0 %v288, 5
    %v318 = vpop.permute.xlu0 %317
    %v320 = vsub.f32 %v267, %v318
    %v321 = vmul.f32 %v320, 1.442695
    %v322 = vpow.pop %v321
    %324 = vrot.lane.b32.xlu0 %v298, 127
    %v325 = vpop.permute.xlu0 %324
    %v327 = vadd.f32 %v291, %v325
    %329 = vrot.lane.b32.xlu0 %v304, 126
    %v330 = vpop.permute.xlu0 %329
    %v332 = vadd.f32 %v327, %v330
    %334 = vrot.lane.b32.xlu0 %v310, 125
    %v335 = vpop.permute.xlu0 %334
    %v337 = vadd.f32 %v332, %v335
    %339 = vrot.lane.b32.xlu0 %v316, 124
    %v340 = vpop.permute.xlu0 %339
    %v342 = vadd.f32 %v337, %v340
    %344 = vrot.lane.b32.xlu0 %v322, 123
    %v345 = vpop.permute.xlu0 %344
    %v347 = vadd.f32 %v342, %v345
    %v348 = vrcp.pop %v347
    %v349 = vmul.f32 %v348, %v291
    %vm350 = vcmask 3072
    %351 = vst.msk [vmem:[#allocation2] sm:$0xf] %vm350, %v349
    %v352 = vmul.f32 %v348, %v325
    %354 = vrot.lane.b32.xlu0 %v352, 1
    %v355 = vpop.permute.xlu0 %354
    %vm357 = vcmask 11272
    %358 = vst.msk [vmem:[#allocation2] sm:$0xf] %vm357, %v355
    %v359 = vmul.f32 %v348, %v330
    %361 = vrot.lane.b32.xlu0 %v359, 2
    %v362 = vpop.permute.xlu0 %361
    %vm364 = vcmask 19472
    %365 = vst.msk [vmem:[#allocation2] sm:$0xf] %vm364, %v362
    %v366 = vmul.f32 %v348, %v335
    %368 = vrot.lane.b32.xlu0 %v366, 3
    %v369 = vpop.permute.xlu0 %368
    %vm371 = vcmask 27672
    %372 = vst.msk [vmem:[#allocation2] sm:$0xf] %vm371, %v369
    %v373 = vmul.f32 %v348, %v340
    %375 = vrot.lane.b32.xlu0 %v373, 4
    %v376 = vpop.permute.xlu0 %375
    %vm378 = vcmask 35872
    %379 = vst.msk [vmem:[#allocation2] sm:$0xf] %vm378, %v376
    %v380 = vmul.f32 %v348, %v345
    %382 = vrot.lane.b32.xlu0 %v380, 5
    %v383 = vpop.permute.xlu0 %382
    %vm385 = vcmask 44072
    %386 = vst.msk [vmem:[#allocation2] sm:$0xf] %vm385, %v383
    %v387 = vld [vmem:[#allocation2] sm:$0xf]
    %v388 = vld [vmem:[%s5] sm:$0xff]
    %v389 = vld [vmem:[%s5 + $0x8] sm:$0xff]
    %v390 = vld [vmem:[#allocation8] sm:$0xff]
    %v391 = vld [vmem:[#allocation8 + $0x8] sm:$0xff]
    %v392 = vld [vmem:[%s7] sm:$0x1]
    %v393 = vld [vmem:[%s8] sm:$0x3]
    %394 = vmatprep.subr.mxu0 0.0
    %395 = vmatpush1.msra.mxu0 %v390
    %396 = vmatprep.subr.mxu0 0.0
    %397 = vmatpush1.msra.mxu0 %v391
    %398 = vmatprep.subr.mxu0 0.0
    %399 = vmatpush1.msra.mxu0 0.0
    %400 = vmatprep.subr.mxu0 0.0
    %401 = vmatpush1.msra.mxu0 0.0
    %402 = vmatprep.subr.mxu0 0.0
    %403 = vmatpush1.msra.mxu0 0.0
    %404 = vmatprep.subr.mxu0 0.0
    %405 = vmatpush1.msra.mxu0 0.0
    %406 = vmatprep.subr.mxu0 0.0
    %407 = vmatpush1.msra.mxu0 0.0
    %408 = vmatprep.subr.mxu0 0.0
    %409 = vmatpush1.msra.mxu0 0.0
    %410 = vmatprep.subr.mxu0 0.0
    %411 = vmatpush1.msra.mxu0 0.0
    %412 = vmatprep.subr.mxu0 0.0
    %413 = vmatpush1.msra.mxu0 0.0
    %414 = vmatprep.subr.mxu0 0.0
    %415 = vmatpush1.msra.mxu0 0.0
    %416 = vmatprep.subr.mxu0 0.0
    %417 = vmatpush1.msra.mxu0 0.0
    %418 = vmatprep.subr.mxu0 0.0
    %419 = vmatpush1.msra.mxu0 0.0
    %420 = vmatprep.subr.mxu0 0.0
    %421 = vmatpush1.msra.mxu0 0.0
    %422 = vmatprep.subr.mxu0 0.0
    %423 = vmatpush1.msra.mxu0 0.0
    %424 = vmatprep.subr.mxu0 0.0
    %425 = vmatpush1.msra.mxu0 0.0
    %426 = vmatprep.subr.mxu0 0.0
    %427 = vmatpush1.msra.mxu0 0.0
    %428 = vmatprep.subr.mxu0 0.0
    %429 = vmatpush1.msra.mxu0 0.0
    %430 = vmatprep.subr.mxu0 0.0
    %431 = vmatpush1.msra.mxu0 0.0
    %432 = vmatprep.subr.mxu0 0.0
    %433 = vmatpush1.msra.mxu0 0.0
    %434 = vmatprep.subr.mxu0 0.0
    %435 = vmatpush1.msra.mxu0 0.0
    %436 = vmatprep.subr.mxu0 0.0
    %437 = vmatpush1.msra.mxu0 0.0
    %438 = vmatprep.subr.mxu0 0.0
    %439 = vmatpush1.msra.mxu0 0.0
    %440 = vmatprep.subr.mxu0 0.0
    %441 = vmatpush1.msra.mxu0 0.0
    %442 = vmatprep.subr.mxu0 0.0
    %443 = vmatpush1.msra.mxu0 0.0
    %444 = vmatprep.subr.mxu0 0.0
    %445 = vmatpush1.msra.mxu0 0.0
    %446 = vmatprep.subr.mxu0 0.0
    %447 = vmatpush1.msra.mxu0 0.0
    %448 = vmatprep.subr.mxu0 0.0
    %449 = vmatpush1.msra.mxu0 0.0
    %450 = vmatprep.subr.mxu0 0.0
    %451 = vmatpush1.msra.mxu0 0.0
    %452 = vmatprep.subr.mxu0 0.0
    %453 = vmatpush1.msra.mxu0 0.0
    %454 = vmatprep.subr.mxu0 0.0
    %455 = vmatpush1.msra.mxu0 0.0
    %456 = vmatprep.subr.mxu0 0.0
    %457 = vmatpush1.msra.mxu0 0.0
    %458 = vmatprep.mubr.f32.mxu0 0.0
    %459 = vmatmul.mubr.f32.gmra.mrb[0].mxu0 %v83
    %v460 = vpop.f32.mrb[0].mxu0
    %v461 = vadd.f32 0.0, %v460
    %v462 = vpop.f32.mrb[0].mxu0
    %463 = vdwg.mxu0
    %464 = vmatprep.subr.mxu0 0.0
    %465 = vmatpush1.msra.mxu0 %v388
    %466 = vmatprep.subr.mxu0 0.0
    %467 = vmatpush1.msra.mxu0 %v389
    %468 = vmatprep.subr.mxu0 0.0
    %469 = vmatpush1.msra.mxu0 0.0
    %470 = vmatprep.subr.mxu0 0.0
    %471 = vmatpush1.msra.mxu0 0.0
    %472 = vmatprep.subr.mxu0 0.0
    %473 = vmatpush1.msra.mxu0 0.0
    %474 = vmatprep.subr.mxu0 0.0
    %475 = vmatpush1.msra.mxu0 0.0
    %476 = vmatprep.subr.mxu0 0.0
    %477 = vmatpush1.msra.mxu0 0.0
    %478 = vmatprep.subr.mxu0 0.0
    %479 = vmatpush1.msra.mxu0 0.0
    %480 = vmatprep.subr.mxu0 0.0
    %481 = vmatpush1.msra.mxu0 0.0
    %482 = vmatprep.subr.mxu0 0.0
    %483 = vmatpush1.msra.mxu0 0.0
    %484 = vmatprep.subr.mxu0 0.0
    %485 = vmatpush1.msra.mxu0 0.0
    %486 = vmatprep.subr.mxu0 0.0
    %487 = vmatpush1.msra.mxu0 0.0
    %488 = vmatprep.subr.mxu0 0.0
    %489 = vmatpush1.msra.mxu0 0.0
    %490 = vmatprep.subr.mxu0 0.0
    %491 = vmatpush1.msra.mxu0 0.0
    %492 = vmatprep.subr.mxu0 0.0
    %493 = vmatpush1.msra.mxu0 0.0
    %494 = vmatprep.subr.mxu0 0.0
    %495 = vmatpush1.msra.mxu0 0.0
    %496 = vmatprep.subr.mxu0 0.0
    %497 = vmatpush1.msra.mxu0 0.0
    %498 = vmatprep.subr.mxu0 0.0
    %499 = vmatpush1.msra.mxu0 0.0
    %500 = vmatprep.subr.mxu0 0.0
    %501 = vmatpush1.msra.mxu0 0.0
    %502 = vmatprep.subr.mxu0 0.0
    %503 = vmatpush1.msra.mxu0 0.0
    %504 = vmatprep.subr.mxu0 0.0
    %505 = vmatpush1.msra.mxu0 0.0
    %506 = vmatprep.subr.mxu0 0.0
    %507 = vmatpush1.msra.mxu0 0.0
    %508 = vmatprep.subr.mxu0 0.0
    %509 = vmatpush1.msra.mxu0 0.0
    %510 = vmatprep.subr.mxu0 0.0
    %511 = vmatpush1.msra.mxu0 0.0
    %512 = vmatprep.subr.mxu0 0.0
    %513 = vmatpush1.msra.mxu0 0.0
    %514 = vmatprep.subr.mxu0 0.0
    %515 = vmatpush1.msra.mxu0 0.0
    %516 = vmatprep.subr.mxu0 0.0
    %517 = vmatpush1.msra.mxu0 0.0
    %518 = vmatprep.subr.mxu0 0.0
    %519 = vmatpush1.msra.mxu0 0.0
    %520 = vmatprep.subr.mxu0 0.0
    %521 = vmatpush1.msra.mxu0 0.0
    %522 = vmatprep.subr.mxu0 0.0
    %523 = vmatpush1.msra.mxu0 0.0
    %524 = vmatprep.subr.mxu0 0.0
    %525 = vmatpush1.msra.mxu0 0.0
    %526 = vmatprep.subr.mxu0 0.0
    %527 = vmatpush1.msra.mxu0 0.0
    %528 = vmatprep.mubr.f32.mxu0 0.0
    %529 = vmatmul.mubr.f32.gmra.mrb[0].mxu0 %v156
    %v530 = vpop.f32.mrb[0].mxu0
    %v531 = vadd.f32 0.0, %v530
    %v532 = vpop.f32.mrb[0].mxu0
    %533 = vdwg.mxu0
    %v534 = vadd.f32 %v461, %v531
    %v536 = vlaneseq
    %v537 = vshrl.u32 %v536, 7
    %v538 = vsub.s32 0, %v537
    %v539 = vrot.slane %v392, %v538
    %v541 = vadd.f32 %v534, %v539
    %v542 = vlaneseq
    %v543 = vshrl.u32 %v542, 7
    %v544 = vsub.s32 0, %v543
    %v545 = vrot.slane %v393, %v544
    %547 = vrot.lane.b32.xlu0 %v545, 36
    %v548 = vpop.permute.xlu0 %547
    %v550 = vsub.f32 %v461, %v548
    %v551 = vmul.f32 %v550, %v550
    %v552 = vmul.f32 %v551, 0.5
    %554 = vrot.lane.b32.xlu0 %v552, 92
    %v555 = vpop.permute.xlu0 %554
    %v557 = vadd.f32 %v541, %v555
    %v558 = vlaneseq
    %v559 = vshrl.u32 %v558, 7
    %v560 = vsub.s32 1, %v559
    %v561 = vrot.slane %v393, %v560
    %563 = vrot.lane.b32.xlu0 %v561, 72
    %v564 = vpop.permute.xlu0 %563
    %v566 = vsub.f32 %v461, %v564
    %v567 = vmul.f32 %v566, %v566
    %v568 = vmul.f32 %v567, 0.5
    %570 = vrot.lane.b32.xlu0 %v568, 56
    %v571 = vpop.permute.xlu0 %570
    %v573 = vadd.f32 %v557, %v571
    %575 = vrot.lane.b32.xlu0 %v573, 122
    %v576 = vpop.permute.xlu0 %575
    %v578 = vmax.f32 %v573, %v576
    %579 = vrot.lane.b32.xlu0 %v573, 116
    %v580 = vpop.permute.xlu0 %579
    %v582 = vmax.f32 %v578, %v580
    %583 = vrot.lane.b32.xlu0 %v573, 110
    %v584 = vpop.permute.xlu0 %583
    %v586 = vmax.f32 %v582, %v584
    %587 = vrot.lane.b32.xlu0 %v573, 104
    %v588 = vpop.permute.xlu0 %587
    %v590 = vmax.f32 %v586, %v588
    %591 = vrot.lane.b32.xlu0 %v573, 98
    %v592 = vpop.permute.xlu0 %591
    %v594 = vmax.f32 %v590, %v592
    %v595 = vsub.f32 %v573, %v594
    %v596 = vmul.f32 %v595, 1.442695
    %v597 = vpow.pop %v596
    %599 = vrot.lane.b32.xlu0 %v594, 6
    %v600 = vpop.permute.xlu0 %599
    %v602 = vsub.f32 %v573, %v600
    %v603 = vmul.f32 %v602, 1.442695
    %v604 = vpow.pop %v603
    %605 = vrot.lane.b32.xlu0 %v594, 12
    %v606 = vpop.permute.xlu0 %605
    %v608 = vsub.f32 %v573, %v606
    %v609 = vmul.f32 %v608, 1.442695
    %v610 = vpow.pop %v609
    %611 = vrot.lane.b32.xlu0 %v594, 18
    %v612 = vpop.permute.xlu0 %611
    %v614 = vsub.f32 %v573, %v612
    %v615 = vmul.f32 %v614, 1.442695
    %v616 = vpow.pop %v615
    %617 = vrot.lane.b32.xlu0 %v594, 24
    %v618 = vpop.permute.xlu0 %617
    %v620 = vsub.f32 %v573, %v618
    %v621 = vmul.f32 %v620, 1.442695
    %v622 = vpow.pop %v621
    %623 = vrot.lane.b32.xlu0 %v594, 30
    %v624 = vpop.permute.xlu0 %623
    %v626 = vsub.f32 %v573, %v624
    %v627 = vmul.f32 %v626, 1.442695
    %v628 = vpow.pop %v627
    %630 = vrot.lane.b32.xlu0 %v604, 122
    %v631 = vpop.permute.xlu0 %630
    %v633 = vadd.f32 %v597, %v631
    %635 = vrot.lane.b32.xlu0 %v610, 116
    %v636 = vpop.permute.xlu0 %635
    %v638 = vadd.f32 %v633, %v636
    %640 = vrot.lane.b32.xlu0 %v616, 110
    %v641 = vpop.permute.xlu0 %640
    %v643 = vadd.f32 %v638, %v641
    %645 = vrot.lane.b32.xlu0 %v622, 104
    %v646 = vpop.permute.xlu0 %645
    %v648 = vadd.f32 %v643, %v646
    %650 = vrot.lane.b32.xlu0 %v628, 98
    %v651 = vpop.permute.xlu0 %650
    %v653 = vadd.f32 %v648, %v651
    %v654 = vrcp.pop %v653
    %v655 = vmul.f32 %v387, %v654
    %v656 = vmul.f32 %v655, %v597
    %vm657 = vcmask 44032
    %658 = vst.msk [vmem:[#allocation2] sm:$0xf] %vm657, %v656
    %v659 = vmul.f32 %v655, %v631
    %661 = vrot.lane.b32.xlu0 %v659, 6
    %v662 = vpop.permute.xlu0 %661
    %vm664 = vcmask 93232
    %665 = vst.msk [vmem:[#allocation2] sm:$0xf] %vm664, %v662
    %v666 = vmul.f32 %v655, %v636
    %668 = vrot.lane.b32.xlu0 %v666, 12
    %v669 = vpop.permute.xlu0 %668
    %vm671 = vcmask 142432
    %672 = vst.msk [vmem:[#allocation2] sm:$0xf] %vm671, %v669
    %v673 = vmul.f32 %v655, %v641
    %675 = vrot.lane.b32.xlu0 %v673, 18
    %v676 = vpop.permute.xlu0 %675
    %vm678 = vcmask 191632
    %679 = vst.msk [vmem:[#allocation2] sm:$0xf] %vm678, %v676
    %v680 = vmul.f32 %v655, %v646
    %682 = vrot.lane.b32.xlu0 %v680, 24
    %v683 = vpop.permute.xlu0 %682
    %vm685 = vcmask 240832
    %686 = vst.msk [vmem:[#allocation2] sm:$0xf] %vm685, %v683
    %v687 = vmul.f32 %v655, %v651
    %689 = vrot.lane.b32.xlu0 %v687, 30
    %v690 = vpop.permute.xlu0 %689
    %vm692 = vcmask 290032
    %693 = vst.msk [vmem:[#allocation2] sm:$0xf] %vm692, %v690
    %v694 = vld [vmem:[#allocation2] sm:$0xf]
    %vm695 = vcmask 289792
    %v696 = vsel %vm695, %v694, -inf
    %697 = vmax.xlane.f32.xlu0 %v696
    %v698 = vpop.xlane.xlu0 %697
    %v699 = vlaneseq
    %v700 = vand.u32 %v699, 127
    %vm701 = vcmp.eq.f32.partialorder %v694, %v698
    %v702 = vsel %vm701, %v700, 36
    %v703 = vsel %vm695, %v702, 2147483647
    %v704 = vand.u32 %v703, 65535
    %v705 = vshra.s32 %v703, 16
    %v706 = vcvt.s32.f32 %v704
    %v707 = vcvt.s32.f32 %v705
    %708 = vmin.xlane.f32.xlu0 %v707
    %v709 = vpop.xlane.xlu0 %708
    %vm710 = vcmp.eq.f32.partialorder %v707, %v709
    %v711 = vsel %vm710, %v706, inf
    %712 = vmin.xlane.f32.xlu0 %v711
    %v713 = vpop.xlane.xlu0 %712
    %v714 = vcvt.f32.s32 %v713
    %v715 = vcvt.f32.s32 %v709
    %v716 = vshll.u32 %v715, 16
    %v717 = vadd.s32 %v716, %v714
    %vm718 = vcmp.eq.s32.totalorder %v700, %v717
    %v719 = vsel %vm718, 1, 0
    %v720 = vcvt.s32.f32 %v719
    %v721 = vld [vmem:[%s9] sm:$0x1f]
    %v722 = vlaneseq
    %v723 = vshrl.u32 %v722, 7
    %v724 = vsub.s32 0, %v723
    %v725 = vrot.slane %v721, %v724
    %v726 = vmul.f32 %v720, %v725
    %v727 = vsel %vm695, %v726, 0.0
    %728 = vadd.xlane.f32.xlu0 %v727
    %v729 = vpop.xlane.xlu0 %728
    %730 = vst.msk [vmem:[#allocation9] sm:$0xf] %vm350, %v729
    %v731 = vlaneseq
    %v732 = vshrl.u32 %v731, 7
    %v733 = vsub.s32 1, %v732
    %v734 = vrot.slane %v721, %v733
    %v735 = vmul.f32 %v720, %v734
    %v736 = vsel %vm695, %v735, 0.0
    %737 = vadd.xlane.f32.xlu0 %v736
    %v738 = vpop.xlane.xlu0 %737
    %739 = vst.msk [vmem:[#allocation9] sm:$0xf] %vm357, %v738
    %v740 = vlaneseq
    %v741 = vshrl.u32 %v740, 7
    %v742 = vsub.s32 2, %v741
    %v743 = vrot.slane %v721, %v742
    %v744 = vmul.f32 %v720, %v743
    %v745 = vsel %vm695, %v744, 0.0
    %746 = vadd.xlane.f32.xlu0 %v745
    %v747 = vpop.xlane.xlu0 %746
    %748 = vst.msk [vmem:[#allocation9] sm:$0xf] %vm364, %v747
    %v749 = vlaneseq
    %v750 = vshrl.u32 %v749, 7
    %v751 = vsub.s32 3, %v750
    %v752 = vrot.slane %v721, %v751
    %v753 = vmul.f32 %v720, %v752
    %v754 = vsel %vm695, %v753, 0.0
    %755 = vadd.xlane.f32.xlu0 %v754
    %v756 = vpop.xlane.xlu0 %755
    %757 = vst.msk [vmem:[#allocation9] sm:$0xf] %vm371, %v756
    %v758 = vlaneseq
    %v759 = vshrl.u32 %v758, 7
    %v760 = vsub.s32 4, %v759
    %v761 = vrot.slane %v721, %v760
    %v762 = vmul.f32 %v720, %v761
    %v763 = vsel %vm695, %v762, 0.0
    %764 = vadd.xlane.f32.xlu0 %v763
    %v765 = vpop.xlane.xlu0 %764
    %766 = vst.msk [vmem:[#allocation9] sm:$0xf] %vm378, %v765
    // Predicated region
    $region54: #{tpu_custom_call.1} parent=1 // pred_check
      _
    $region55: #{tpu_custom_call.1} parent=1 // pred_check_branch
      %768 = sbr.rel (0) target = $region57
    $region56: #{tpu_custom_call.1} parent=1 // pred_region
      %s770 = ssub.s32 64, 64
      %771 = vsyncadd [#allocation5], %s770
      %s773 = sshll.u32 [#allocation9], 4
      %s774 = int_to_ptr.vmem [resolvable:$true] %s773
      %776 = dma.vmem_to_hbm [thread:$0]  %s774, 64, %s10, [#allocation5]
    $region57: #{tpu_custom_call.1} parent=1 // pred_fallthru
      _
    // Predicated region
    $region58: #{tpu_custom_call.1} parent=1 // pred_check
      _
    $region59: #{tpu_custom_call.1} parent=1 // pred_check_branch
      %778 = sbr.rel (0) target = $region61
    $region60: #{tpu_custom_call.1} parent=1 // pred_region
      %779 = dma.done [#allocation5], 64
    $region61: #{tpu_custom_call.1} parent=1 // pred_fallthru
      _
    %780 = vsyncpa [#allocation4], 1
    %781 = vsyncpa [#allocation7], 1
    %782 = vsyncpa [#allocation5], 1

</llo_original>
